<compile_context>
chip_gen: v6e
topology: v6e:2x2x1
jax: 0.10.0
libtpu: 0.0.40
codegen_flags: <defaults>
</compile_context>

<pallas_src>
import functools

import jax
import jax.numpy as jnp
from jax.experimental import pallas as pl
from jax.experimental.pallas import tpu as pltpu

LANE = 128            # lane width (min f32 tile in the last dim)
SUB = 8               # sublane multiple for f32
NUM_LAYERS = 4
TB_MAX = 1024         # batch tile for big batches (amortizes ~0.35us/step overhead)
_BUCKETS = (8, 32, 128, 512, 1024, 2048)   # compile-once batch-padding buckets


def _pad2(x, rows, cols):
    r, c = x.shape
    return jnp.pad(x, ((0, rows - r), (0, cols - c)))


def _bucket_batch(b):
    """Round the batch up to a small fixed set of sizes (avoids recompiles)."""
    for cap in _BUCKETS:
        if b <= cap:
            return cap
    big = _BUCKETS[-1]
    return ((b + big - 1) // big) * big


def _is_v7x():
    try:
        kind = jax.devices()[0].device_kind.lower()
    except Exception:
        return False
    return "v7" in kind or "tpu7" in kind


def critic_kernel(x_ref, w_ref, b_ref, o_ref, *, d_in):
    # Entire 4-layer MLP (matmul + bias + ReLU) fused; weights/biases are
    # VMEM-resident (invariant index_map), activations are one batch tile.
    x = x_ref[...]                                          # (tb, d_in), no dead lanes
    # Layer 1: contract only the d_in real input rows of the padded W0.
    h = jnp.dot(x, w_ref[0][:d_in, :], preferred_element_type=jnp.float32)
    h = jnp.maximum(h + b_ref[0], 0.0)
    # Layer 2: 120 real features -> full 128-lane contraction (pad rows are 0).
    h = jnp.dot(h, w_ref[1], preferred_element_type=jnp.float32)
    h = jnp.maximum(h + b_ref[1], 0.0)
    # Layer 3: 60 real features -> contract only the first 64 (sublane-aligned).
    h = jnp.dot(h[:, :64], w_ref[2][:64, :], preferred_element_type=jnp.float32)
    h = jnp.maximum(h + b_ref[2], 0.0)
    # Layer 4: 20 real features -> contract only the first 32.
    h = jnp.dot(h[:, :32], w_ref[3][:32, :], preferred_element_type=jnp.float32)
    h = jnp.maximum(h + b_ref[3], 0.0)
    # Only lane 0 carries the real critic value; write back a single lane.
    o_ref[...] = h[:, :1]


def init_critic_params(key, nstate, naction):
    """PyTorch-default-style init (uniform +/- 1/sqrt(fan_in)), deterministic."""
    dims = [nstate + naction, 120, 60, 20, 1]
    params = []
    for i in range(NUM_LAYERS):
        fan_in, fan_out = dims[i], dims[i + 1]
        key, kw, kb = jax.random.split(key, 3)
        bound = 1.0 / jnp.sqrt(jnp.float32(fan_in))
        w = jax.random.uniform(kw, (fan_in, fan_out), jnp.float32, -bound, bound)
        b = jax.random.uniform(kb, (fan_out,), jnp.float32, -bound, bound)
        params.append((w, b))
    return params


def pack_critic_params(params):
    """Pad each layer to (128,128)/(1,128) and stack once, at init time."""
    ws, bs = [], []
    for (w, b) in params:
        assert w.shape[0] <= LANE and w.shape[1] <= LANE, w.shape
        ws.append(_pad2(w.astype(jnp.float32), LANE, LANE))
        bs.append(_pad2(b.reshape(1, -1).astype(jnp.float32), 1, LANE))
    w_stack = jnp.stack(ws)   # (4, 128, 128) -- zero-padded (required for correctness)
    b_stack = jnp.stack(bs)   # (4, 1, 128)
    return w_stack, b_stack


@jax.jit
def critic_forward(x, w_stack, b_stack):
    """x: (B, nstate + naction). Returns (B, 1) float32, matching the PyTorch module."""
    x = x.astype(jnp.float32)
    B, d_in = x.shape
    assert d_in <= LANE, "input feature dim must fit one 128-lane tile"

    b_pad = _bucket_batch(B)
    tb = min(b_pad, TB_MAX)
    n_steps = b_pad // tb
    # Pad only the batch dim (rows); the feature dim stays at d_in so no dead
    # lanes are DMA'd into the kernel.
    x_p = jnp.pad(x, ((0, b_pad - B), (0, 0)))

    # x: one batch tile per grid step; deeper pipelining when there are enough
    # steps to overlap DMA with the short dependent matmul chain.
    if n_steps >= 3:
        x_spec = pl.BlockSpec((tb, d_in), lambda i: (i, 0),
                              pipeline_mode=pl.Buffered(3))
    else:
        x_spec = pl.BlockSpec((tb, d_in), lambda i: (i, 0))

    # v7x has 2 TensorCores per chip: shard the batch grid across them when
    # there is more than one step. Plain PARALLEL elsewhere (no-op on 1-TC chips).
    if _is_v7x() and n_steps >= 2:
        dim_sem = (pltpu.CORE_PARALLEL,)
    else:
        dim_sem = (pltpu.PARALLEL,)

    out = pl.pallas_call(
        functools.partial(critic_kernel, d_in=d_in),
        out_shape=jax.ShapeDtypeStruct((b_pad, 1), jnp.float32),
        grid=(n_steps,),
        in_specs=[
            x_spec,
            # weights / biases: invariant block -> stay VMEM-resident.
            pl.BlockSpec((NUM_LAYERS, LANE, LANE), lambda i: (0, 0, 0)),
            pl.BlockSpec((NUM_LAYERS, 1, LANE), lambda i: (0, 0, 0)),
        ],
        out_specs=pl.BlockSpec((tb, 1), lambda i: (i, 0)),
        compiler_params=pltpu.CompilerParams(dimension_semantics=dim_sem),
    )(x_p, w_stack, b_stack)

    return out[:B]


def critic_reference(x, params):
    h = x.astype(jnp.float32)
    for (w, b) in params:
        h = jnp.maximum(h @ w + b, 0.0)   # spec applies ReLU on the last layer too
    return h


if __name__ == "__main__":
    nstate, naction = 6, 2
    batch = 2

    key = jax.random.PRNGKey(0)
    kparam, kx = jax.random.split(key)
    params = init_critic_params(kparam, nstate, naction)
    w_stack, b_stack = pack_critic_params(params)   # padded once, reused per call

    x = jax.random.normal(kx, (batch, nstate + naction), jnp.float32)

    out = jax.block_until_ready(critic_forward(x, w_stack, b_stack))
    ref = critic_reference(x, params)
    assert out.shape == (batch, 1), out.shape
    assert jnp.allclose(out, ref, atol=1e-5, rtol=1e-5), (out, ref)

    # Sanity-check a larger batch path (exercises batch bucketing / tiling).
    xb = jax.random.normal(jax.random.PRNGKey(1), (300, nstate + naction), jnp.float32)
    outb = jax.block_until_ready(critic_forward(xb, w_stack, b_stack))
    refb = critic_reference(xb, params)
    assert outb.shape == (300, 1), outb.shape
    assert jnp.allclose(outb, refb, atol=1e-5, rtol=1e-5)

    print("KERNEL_OK")
</pallas_src>

<mosaic_0001>
module attributes {stable_mosaic.version = 11 : i64} {
  func.func @critic_kernel(%arg0: i32, %arg1: memref<8x8xf32, #tpu.memory_space<vmem>>, %arg2: memref<4x128x128xf32, #tpu.memory_space<vmem>>, %arg3: memref<4x1x128xf32, #tpu.memory_space<vmem>>, %arg4: memref<8x1xf32, #tpu.memory_space<vmem>>) attributes {dimension_semantics = [#tpu.dimension_semantics<parallel>], iteration_bounds = array<i64: 1>, scalar_prefetch = 0 : i64, scratch_operands = 0 : i64, tpu.core_type = #tpu.core_type<tc>, window_params = [{transform_indices = @transform_0, window_bounds = array<i64: 8, 8>}, {pipeline_mode = #tpu.pipeline_mode<synchronous>, transform_indices = @transform_1, window_bounds = array<i64: 4, 128, 128>}, {pipeline_mode = #tpu.pipeline_mode<synchronous>, transform_indices = @transform_2, window_bounds = array<i64: 4, 1, 128>}, {transform_indices = @transform_3, window_bounds = array<i64: 8, 1>}]} {
    %c0 = arith.constant 0 : index
    %c0_0 = arith.constant 0 : index
    %0 = vector.load %arg1[%c0, %c0_0] : memref<8x8xf32, #tpu.memory_space<vmem>>, vector<8x8xf32>
    %c0_1 = arith.constant 0 : index
    %c0_2 = arith.constant 0 : index
    %c0_3 = arith.constant 0 : index
    %1 = vector.load %arg2[%c0_1, %c0_2, %c0_3] : memref<4x128x128xf32, #tpu.memory_space<vmem>>, vector<1x128x128xf32>
    %2 = vector.shape_cast %1 : vector<1x128x128xf32> to vector<128x128xf32>
    %3 = vector.extract_strided_slice %2 {offsets = [0, 0], sizes = [8, 128], strides = [1, 1]} : vector<128x128xf32> to vector<8x128xf32>
    %cst = arith.constant dense<0.000000e+00> : vector<8x128xf32>
    %4 = tpu.matmul %0, %3, %cst {dimension_numbers = #tpu.dot_dimension_numbers<[1], [0], [0], [1], [0, 0, 1, 1], [], []>} : vector<8x8xf32>, vector<8x128xf32>, vector<8x128xf32> -> vector<8x128xf32>
    %c0_4 = arith.constant 0 : index
    %c0_5 = arith.constant 0 : index
    %c0_6 = arith.constant 0 : index
    %5 = vector.load %arg3[%c0_4, %c0_5, %c0_6] : memref<4x1x128xf32, #tpu.memory_space<vmem>>, vector<1x1x128xf32>
    %6 = vector.shape_cast %5 : vector<1x1x128xf32> to vector<1x128xf32>
    %7 = vector.broadcast %6 : vector<1x128xf32> to vector<8x128xf32>
    %8 = arith.addf %4, %7 : vector<8x128xf32>
    %cst_7 = arith.constant 0.000000e+00 : f32
    %9 = vector.broadcast %cst_7 : f32 to vector<8x128xf32>
    %10 = arith.maximumf %8, %9 : vector<8x128xf32>
    %c1 = arith.constant 1 : index
    %c0_8 = arith.constant 0 : index
    %c0_9 = arith.constant 0 : index
    %11 = vector.load %arg2[%c1, %c0_8, %c0_9] : memref<4x128x128xf32, #tpu.memory_space<vmem>>, vector<1x128x128xf32>
    %12 = vector.shape_cast %11 : vector<1x128x128xf32> to vector<128x128xf32>
    %cst_10 = arith.constant dense<0.000000e+00> : vector<8x128xf32>
    %13 = tpu.matmul %10, %12, %cst_10 {dimension_numbers = #tpu.dot_dimension_numbers<[1], [0], [0], [1], [0, 0, 1, 1], [], []>} : vector<8x128xf32>, vector<128x128xf32>, vector<8x128xf32> -> vector<8x128xf32>
    %c1_11 = arith.constant 1 : index
    %c0_12 = arith.constant 0 : index
    %c0_13 = arith.constant 0 : index
    %14 = vector.load %arg3[%c1_11, %c0_12, %c0_13] : memref<4x1x128xf32, #tpu.memory_space<vmem>>, vector<1x1x128xf32>
    %15 = vector.shape_cast %14 : vector<1x1x128xf32> to vector<1x128xf32>
    %16 = vector.broadcast %15 : vector<1x128xf32> to vector<8x128xf32>
    %17 = arith.addf %13, %16 : vector<8x128xf32>
    %cst_14 = arith.constant 0.000000e+00 : f32
    %18 = vector.broadcast %cst_14 : f32 to vector<8x128xf32>
    %19 = arith.maximumf %17, %18 : vector<8x128xf32>
    %20 = vector.extract_strided_slice %19 {offsets = [0, 0], sizes = [8, 64], strides = [1, 1]} : vector<8x128xf32> to vector<8x64xf32>
    %c2 = arith.constant 2 : index
    %c0_15 = arith.constant 0 : index
    %c0_16 = arith.constant 0 : index
    %21 = vector.load %arg2[%c2, %c0_15, %c0_16] : memref<4x128x128xf32, #tpu.memory_space<vmem>>, vector<1x128x128xf32>
    %22 = vector.shape_cast %21 : vector<1x128x128xf32> to vector<128x128xf32>
    %23 = vector.extract_strided_slice %22 {offsets = [0, 0], sizes = [64, 128], strides = [1, 1]} : vector<128x128xf32> to vector<64x128xf32>
    %cst_17 = arith.constant dense<0.000000e+00> : vector<8x128xf32>
    %24 = tpu.matmul %20, %23, %cst_17 {dimension_numbers = #tpu.dot_dimension_numbers<[1], [0], [0], [1], [0, 0, 1, 1], [], []>} : vector<8x64xf32>, vector<64x128xf32>, vector<8x128xf32> -> vector<8x128xf32>
    %c2_18 = arith.constant 2 : index
    %c0_19 = arith.constant 0 : index
    %c0_20 = arith.constant 0 : index
    %25 = vector.load %arg3[%c2_18, %c0_19, %c0_20] : memref<4x1x128xf32, #tpu.memory_space<vmem>>, vector<1x1x128xf32>
    %26 = vector.shape_cast %25 : vector<1x1x128xf32> to vector<1x128xf32>
    %27 = vector.broadcast %26 : vector<1x128xf32> to vector<8x128xf32>
    %28 = arith.addf %24, %27 : vector<8x128xf32>
    %cst_21 = arith.constant 0.000000e+00 : f32
    %29 = vector.broadcast %cst_21 : f32 to vector<8x128xf32>
    %30 = arith.maximumf %28, %29 : vector<8x128xf32>
    %31 = vector.extract_strided_slice %30 {offsets = [0, 0], sizes = [8, 32], strides = [1, 1]} : vector<8x128xf32> to vector<8x32xf32>
    %c3 = arith.constant 3 : index
    %c0_22 = arith.constant 0 : index
    %c0_23 = arith.constant 0 : index
    %32 = vector.load %arg2[%c3, %c0_22, %c0_23] : memref<4x128x128xf32, #tpu.memory_space<vmem>>, vector<1x128x128xf32>
    %33 = vector.shape_cast %32 : vector<1x128x128xf32> to vector<128x128xf32>
    %34 = vector.extract_strided_slice %33 {offsets = [0, 0], sizes = [32, 128], strides = [1, 1]} : vector<128x128xf32> to vector<32x128xf32>
    %cst_24 = arith.constant dense<0.000000e+00> : vector<8x128xf32>
    %35 = tpu.matmul %31, %34, %cst_24 {dimension_numbers = #tpu.dot_dimension_numbers<[1], [0], [0], [1], [0, 0, 1, 1], [], []>} : vector<8x32xf32>, vector<32x128xf32>, vector<8x128xf32> -> vector<8x128xf32>
    %c3_25 = arith.constant 3 : index
    %c0_26 = arith.constant 0 : index
    %c0_27 = arith.constant 0 : index
    %36 = vector.load %arg3[%c3_25, %c0_26, %c0_27] : memref<4x1x128xf32, #tpu.memory_space<vmem>>, vector<1x1x128xf32>
    %37 = vector.shape_cast %36 : vector<1x1x128xf32> to vector<1x128xf32>
    %38 = vector.broadcast %37 : vector<1x128xf32> to vector<8x128xf32>
    %39 = arith.addf %35, %38 : vector<8x128xf32>
    %cst_28 = arith.constant 0.000000e+00 : f32
    %40 = vector.broadcast %cst_28 : f32 to vector<8x128xf32>
    %41 = arith.maximumf %39, %40 : vector<8x128xf32>
    %42 = vector.extract_strided_slice %41 {offsets = [0, 0], sizes = [8, 1], strides = [1, 1]} : vector<8x128xf32> to vector<8x1xf32>
    %c0_29 = arith.constant 0 : index
    %c0_30 = arith.constant 0 : index
    %43 = vector.load %arg4[%c0_29, %c0_30] : memref<8x1xf32, #tpu.memory_space<vmem>>, vector<8x1xf32>
    tpu.vector_store %arg4[%c0_29, %c0_30], %42 {strides = array<i32>} : memref<8x1xf32, #tpu.memory_space<vmem>>, vector<8x1xf32>,
    return
  }
  func.func @transform_0(%arg0: i32) -> (i32, i32) {
    %c0_i32 = arith.constant 0 : i32
    %c0_i32_0 = arith.constant 0 : i32
    return %arg0, %c0_i32 : i32, i32
  }
  func.func @transform_1(%arg0: i32) -> (i32, i32, i32) {
    %c0_i32 = arith.constant 0 : i32
    %c0_i32_0 = arith.constant 0 : i32
    %c0_i32_1 = arith.constant 0 : i32
    %c0_i32_2 = arith.constant 0 : i32
    return %c0_i32, %c0_i32_0, %c0_i32_1 : i32, i32, i32
  }
  func.func @transform_2(%arg0: i32) -> (i32, i32, i32) {
    %c0_i32 = arith.constant 0 : i32
    %c0_i32_0 = arith.constant 0 : i32
    %c0_i32_1 = arith.constant 0 : i32
    %c0_i32_2 = arith.constant 0 : i32
    return %c0_i32, %c0_i32_0, %c0_i32_1 : i32, i32, i32
  }
  func.func @transform_3(%arg0: i32) -> (i32, i32) {
    %c0_i32 = arith.constant 0 : i32
    %c0_i32_0 = arith.constant 0 : i32
    return %arg0, %c0_i32 : i32, i32
  }
}

</mosaic_0001>

<llo_original>
// kernel: critic_forward.1
$region0: #{critic_forward.1}
  #allocation0 [shape = 'u32[]', space=smem, size = 0x4, offset = 0x4, fixed_abs, tag = 'smem constant byte address 0x4 - core index']
  #allocation1 [shape = 'u32[144,128]{1,0:T(1,128)}', space=vmem, size = 0x12000, scoped, tag = 'internal scratch']
  %s0 = inlined_call_operand.vmem [shape: f32[8,8], index: 0, kind: input, shape index: {}]
  %s1 = inlined_call_operand.hbm [shape: f32[4,128,128], index: 1, kind: input, shape index: {}]
  %s2 = inlined_call_operand.vmem [shape: f32[4,1,128], index: 2, kind: input, shape index: {}]
  %s3 = inlined_call_operand.vmem [shape: f32[8,1], index: 3, kind: output, shape index: {}]
  %s4 = sld [smem:[#allocation0]]
  $region26: #{critic_forward.1} parent=0
    _
  %s6 = ssub.s32 1, %s4
  %s7 = scalar_select 0, %s6, %s4
  $region1: #{critic_forward.1} parent=0
    #allocation2 [shape = 'u8[262144]{0}', space=vmem, size = 0x40000, scoped, tag = 'input window, operand 1, single buffered']
    #allocation3 [shape = 's32[1]{0}', space=sflag, size = 0x4, scoped, tag = 'scoped memory for critic_forward.1']
    %8 = vsyncpa [#allocation3], 0
    // Predicated region
    $region2: #{critic_forward.1} parent=1 // pred_check
      _
    $region3: #{critic_forward.1} parent=1 // pred_check_branch
      %10 = sbr.rel (0) target = $region5
    $region4: #{critic_forward.1} parent=1 // pred_region
      _
    $region5: #{critic_forward.1} parent=1 // pred_fallthru
      _
    // Predicated region
    $region6: #{critic_forward.1} parent=1 // pred_check
      _
    $region7: #{critic_forward.1} parent=1 // pred_check_branch
      %12 = sbr.rel (0) target = $region9
    $region8: #{critic_forward.1} parent=1 // pred_region
      %s14 = ssub.s32 8192, 8192
      %15 = vsyncadd [#allocation3], %s14
      %s16 = sshll.u32 [#allocation2], 4
      %s17 = int_to_ptr.vmem [resolvable:$true] %s16
      %22 = dma.hbm_to_vmem [thread:$0]  %s1, 8192, %s17, [#allocation3], 128, 128, 8
    $region9: #{critic_forward.1} parent=1 // pred_fallthru
      _
    // Predicated region
    $region10: #{critic_forward.1} parent=1 // pred_check
      _
    $region11: #{critic_forward.1} parent=1 // pred_check_branch
      %24 = sbr.rel (0) target = $region13
    $region12: #{critic_forward.1} parent=1 // pred_region
      _
    $region13: #{critic_forward.1} parent=1 // pred_fallthru
      _
    // Predicated region
    $region14: #{critic_forward.1} parent=1 // pred_check
      _
    $region15: #{critic_forward.1} parent=1 // pred_check_branch
      %26 = sbr.rel (0) target = $region17
    $region16: #{critic_forward.1} parent=1 // pred_region
      %27 = dma.done [#allocation3], 8192
    $region17: #{critic_forward.1} parent=1 // pred_fallthru
      _
    %v28 = vld [vmem:[%s0] sm:$0xff]
    %v29 = vld [vmem:[#allocation2] sm:$0xff]
    %v30 = vld [vmem:[%s2] sm:$0x1]
    %v32 = vlaneseq
    %v33 = vshrl.u32 %v32, 7
    %v34 = vsub.s32 0, %v33
    %v35 = vrot.slane %v30, %v34
    %vm37 = vcmask 64512
    %v39 = vsel %vm37, %v28, 0
    %41 = vmatprep.subr.mxu0 0.0
    %42 = vmatpush1.msra.mxu0 0.0
    %43 = vmatprep.subr.mxu0 0.0
    %44 = vmatpush1.msra.mxu0 0.0
    %45 = vmatprep.subr.mxu0 0.0
    %46 = vmatpush1.msra.mxu0 0.0
    %47 = vmatprep.subr.mxu0 0.0
    %48 = vmatpush1.msra.mxu0 0.0
    %49 = vmatprep.subr.mxu0 0.0
    %50 = vmatpush1.msra.mxu0 0.0
    %51 = vmatprep.subr.mxu0 0.0
    %52 = vmatpush1.msra.mxu0 0.0
    %53 = vmatprep.subr.mxu0 0.0
    %54 = vmatpush1.msra.mxu0 0.0
    %55 = vmatprep.subr.mxu0 0.0
    %56 = vmatpush1.msra.mxu0 0.0
    %57 = vmatprep.subr.mxu0 0.0
    %58 = vmatpush1.msra.mxu0 0.0
    %59 = vmatprep.subr.mxu0 0.0
    %60 = vmatpush1.msra.mxu0 0.0
    %61 = vmatprep.subr.mxu0 0.0
    %62 = vmatpush1.msra.mxu0 0.0
    %63 = vmatprep.subr.mxu0 0.0
    %64 = vmatpush1.msra.mxu0 0.0
    %65 = vmatprep.subr.mxu0 0.0
    %66 = vmatpush1.msra.mxu0 0.0
    %67 = vmatprep.subr.mxu0 0.0
    %68 = vmatpush1.msra.mxu0 0.0
    %69 = vmatprep.subr.mxu0 0.0
    %70 = vmatpush1.msra.mxu0 0.0
    %71 = vmatprep.subr.mxu0 0.0
    %72 = vmatpush1.msra.mxu0 %v29
    %73 = vmatprep.subr.mxu0 0.0
    %74 = vmatpush2.msra.mxu0 0.0
    %75 = vmatprep.subr.mxu0 0.0
    %76 = vmatpush2.msra.mxu0 0.0
    %77 = vmatprep.subr.mxu0 0.0
    %78 = vmatpush2.msra.mxu0 0.0
    %79 = vmatprep.subr.mxu0 0.0
    %80 = vmatpush2.msra.mxu0 0.0
    %81 = vmatprep.subr.mxu0 0.0
    %82 = vmatpush2.msra.mxu0 0.0
    %83 = vmatprep.subr.mxu0 0.0
    %84 = vmatpush2.msra.mxu0 0.0
    %85 = vmatprep.subr.mxu0 0.0
    %86 = vmatpush2.msra.mxu0 0.0
    %87 = vmatprep.subr.mxu0 0.0
    %88 = vmatpush2.msra.mxu0 0.0
    %89 = vmatprep.subr.mxu0 0.0
    %90 = vmatpush2.msra.mxu0 0.0
    %91 = vmatprep.subr.mxu0 0.0
    %92 = vmatpush2.msra.mxu0 0.0
    %93 = vmatprep.subr.mxu0 0.0
    %94 = vmatpush2.msra.mxu0 0.0
    %95 = vmatprep.subr.mxu0 0.0
    %96 = vmatpush2.msra.mxu0 0.0
    %97 = vmatprep.subr.mxu0 0.0
    %98 = vmatpush2.msra.mxu0 0.0
    %99 = vmatprep.subr.mxu0 0.0
    %100 = vmatpush2.msra.mxu0 0.0
    %101 = vmatprep.subr.mxu0 0.0
    %102 = vmatpush2.msra.mxu0 0.0
    %103 = vmatprep.subr.mxu0 0.0
    %104 = vmatpush2.msra.mxu0 0.0
    %105 = vmatprep.mubr.f32.mxu0 0.0
    %106 = vmatmul.mubr.f32.gmra.mxu0 %v39
    %v107 = vpop.f32.mrf.mxu0
    %v108 = vadd.f32 %v35, %v107
    %v109 = vpop.f32.mrf.mxu0
    %110 = vdwg.mxu0
    %v111 = vmax.f32 %v108, 0.0
    %s112 = scalar_lea.vmem [#allocation2], 128
    %v113 = vld [vmem:[%s112] sm:$0xff]
    %v114 = vld [vmem:[%s112 + $0x8] sm:$0xff]
    %v115 = vld [vmem:[%s112 + $0x10] sm:$0xff]
    %v116 = vld [vmem:[%s112 + $0x18] sm:$0xff]
    %v117 = vld [vmem:[%s112 + $0x20] sm:$0xff]
    %v118 = vld [vmem:[%s112 + $0x28] sm:$0xff]
    %v119 = vld [vmem:[%s112 + $0x30] sm:$0xff]
    %v120 = vld [vmem:[%s112 + $0x38] sm:$0xff]
    %v121 = vld [vmem:[%s112 + $0x40] sm:$0xff]
    %v122 = vld [vmem:[%s112 + $0x48] sm:$0xff]
    %v123 = vld [vmem:[%s112 + $0x50] sm:$0xff]
    %v124 = vld [vmem:[%s112 + $0x58] sm:$0xff]
    %v125 = vld [vmem:[%s112 + $0x60] sm:$0xff]
    %v126 = vld [vmem:[%s112 + $0x68] sm:$0xff]
    %v127 = vld [vmem:[%s112 + $0x70] sm:$0xff]
    %v128 = vld [vmem:[%s112 + $0x78] sm:$0xff]
    %s129 = scalar_lea.vmem %s2, 1
    %v130 = vld [vmem:[%s129] sm:$0x1]
    %v132 = vlaneseq
    %v133 = vshrl.u32 %v132, 7
    %v134 = vsub.s32 0, %v133
    %v135 = vrot.slane %v130, %v134
    %137 = vmatprep.subr.mxu0 0.0
    %138 = vmatpush1.msra.mxu0 %v128
    %139 = vmatprep.subr.mxu0 0.0
    %140 = vmatpush1.msra.mxu0 %v127
    %141 = vmatprep.subr.mxu0 0.0
    %142 = vmatpush1.msra.mxu0 %v126
    %143 = vmatprep.subr.mxu0 0.0
    %144 = vmatpush1.msra.mxu0 %v125
    %145 = vmatprep.subr.mxu0 0.0
    %146 = vmatpush1.msra.mxu0 %v124
    %147 = vmatprep.subr.mxu0 0.0
    %148 = vmatpush1.msra.mxu0 %v123
    %149 = vmatprep.subr.mxu0 0.0
    %150 = vmatpush1.msra.mxu0 %v122
    %151 = vmatprep.subr.mxu0 0.0
    %152 = vmatpush1.msra.mxu0 %v121
    %153 = vmatprep.subr.mxu0 0.0
    %154 = vmatpush1.msra.mxu0 %v120
    %155 = vmatprep.subr.mxu0 0.0
    %156 = vmatpush1.msra.mxu0 %v119
    %157 = vmatprep.subr.mxu0 0.0
    %158 = vmatpush1.msra.mxu0 %v118
    %159 = vmatprep.subr.mxu0 0.0
    %160 = vmatpush1.msra.mxu0 %v117
    %161 = vmatprep.subr.mxu0 0.0
    %162 = vmatpush1.msra.mxu0 %v116
    %163 = vmatprep.subr.mxu0 0.0
    %164 = vmatpush1.msra.mxu0 %v115
    %165 = vmatprep.subr.mxu0 0.0
    %166 = vmatpush1.msra.mxu0 %v114
    %167 = vmatprep.subr.mxu0 0.0
    %168 = vmatpush1.msra.mxu0 %v113
    %169 = vmatprep.subr.mxu0 0.0
    %170 = vmatpush2.msra.mxu0 0.0
    %171 = vmatprep.subr.mxu0 0.0
    %172 = vmatpush2.msra.mxu0 0.0
    %173 = vmatprep.subr.mxu0 0.0
    %174 = vmatpush2.msra.mxu0 0.0
    %175 = vmatprep.subr.mxu0 0.0
    %176 = vmatpush2.msra.mxu0 0.0
    %177 = vmatprep.subr.mxu0 0.0
    %178 = vmatpush2.msra.mxu0 0.0
    %179 = vmatprep.subr.mxu0 0.0
    %180 = vmatpush2.msra.mxu0 0.0
    %181 = vmatprep.subr.mxu0 0.0
    %182 = vmatpush2.msra.mxu0 0.0
    %183 = vmatprep.subr.mxu0 0.0
    %184 = vmatpush2.msra.mxu0 0.0
    %185 = vmatprep.subr.mxu0 0.0
    %186 = vmatpush2.msra.mxu0 0.0
    %187 = vmatprep.subr.mxu0 0.0
    %188 = vmatpush2.msra.mxu0 0.0
    %189 = vmatprep.subr.mxu0 0.0
    %190 = vmatpush2.msra.mxu0 0.0
    %191 = vmatprep.subr.mxu0 0.0
    %192 = vmatpush2.msra.mxu0 0.0
    %193 = vmatprep.subr.mxu0 0.0
    %194 = vmatpush2.msra.mxu0 0.0
    %195 = vmatprep.subr.mxu0 0.0
    %196 = vmatpush2.msra.mxu0 0.0
    %197 = vmatprep.subr.mxu0 0.0
    %198 = vmatpush2.msra.mxu0 0.0
    %199 = vmatprep.subr.mxu0 0.0
    %200 = vmatpush2.msra.mxu0 0.0
    %201 = vmatprep.mubr.f32.mxu0 0.0
    %202 = vmatmul.mubr.f32.gmra.mxu0 %v111
    %v203 = vpop.f32.mrf.mxu0
    %v204 = vadd.f32 %v135, %v203
    %v205 = vpop.f32.mrf.mxu0
    %206 = vdwg.mxu0
    %v207 = vmax.f32 %v204, 0.0
    %s208 = scalar_lea.vmem [#allocation2], 256
    %v209 = vld [vmem:[%s208] sm:$0xff]
    %v210 = vld [vmem:[%s208 + $0x8] sm:$0xff]
    %v211 = vld [vmem:[%s208 + $0x10] sm:$0xff]
    %v212 = vld [vmem:[%s208 + $0x18] sm:$0xff]
    %v213 = vld [vmem:[%s208 + $0x20] sm:$0xff]
    %v214 = vld [vmem:[%s208 + $0x28] sm:$0xff]
    %v215 = vld [vmem:[%s208 + $0x30] sm:$0xff]
    %v216 = vld [vmem:[%s208 + $0x38] sm:$0xff]
    %s217 = scalar_lea.vmem %s2, 2
    %v218 = vld [vmem:[%s217] sm:$0x1]
    %v220 = vlaneseq
    %v221 = vshrl.u32 %v220, 7
    %v222 = vsub.s32 0, %v221
    %v223 = vrot.slane %v218, %v222
    %vm225 = vcmask 523264
    %v227 = vsel %vm225, %v207, 0
    %229 = vmatprep.subr.mxu0 0.0
    %230 = vmatpush1.msra.mxu0 0.0
    %231 = vmatprep.subr.mxu0 0.0
    %232 = vmatpush1.msra.mxu0 0.0
    %233 = vmatprep.subr.mxu0 0.0
    %234 = vmatpush1.msra.mxu0 0.0
    %235 = vmatprep.subr.mxu0 0.0
    %236 = vmatpush1.msra.mxu0 0.0
    %237 = vmatprep.subr.mxu0 0.0
    %238 = vmatpush1.msra.mxu0 0.0
    %239 = vmatprep.subr.mxu0 0.0
    %240 = vmatpush1.msra.mxu0 0.0
    %241 = vmatprep.subr.mxu0 0.0
    %242 = vmatpush1.msra.mxu0 0.0
    %243 = vmatprep.subr.mxu0 0.0
    %244 = vmatpush1.msra.mxu0 0.0
    %245 = vmatprep.subr.mxu0 0.0
    %246 = vmatpush1.msra.mxu0 %v216
    %247 = vmatprep.subr.mxu0 0.0
    %248 = vmatpush1.msra.mxu0 %v215
    %249 = vmatprep.subr.mxu0 0.0
    %250 = vmatpush1.msra.mxu0 %v214
    %251 = vmatprep.subr.mxu0 0.0
    %252 = vmatpush1.msra.mxu0 %v213
    %253 = vmatprep.subr.mxu0 0.0
    %254 = vmatpush1.msra.mxu0 %v212
    %255 = vmatprep.subr.mxu0 0.0
    %256 = vmatpush1.msra.mxu0 %v211
    %257 = vmatprep.subr.mxu0 0.0
    %258 = vmatpush1.msra.mxu0 %v210
    %259 = vmatprep.subr.mxu0 0.0
    %260 = vmatpush1.msra.mxu0 %v209
    %261 = vmatprep.subr.mxu0 0.0
    %262 = vmatpush2.msra.mxu0 0.0
    %263 = vmatprep.subr.mxu0 0.0
    %264 = vmatpush2.msra.mxu0 0.0
    %265 = vmatprep.subr.mxu0 0.0
    %266 = vmatpush2.msra.mxu0 0.0
    %267 = vmatprep.subr.mxu0 0.0
    %268 = vmatpush2.msra.mxu0 0.0
    %269 = vmatprep.subr.mxu0 0.0
    %270 = vmatpush2.msra.mxu0 0.0
    %271 = vmatprep.subr.mxu0 0.0
    %272 = vmatpush2.msra.mxu0 0.0
    %273 = vmatprep.subr.mxu0 0.0
    %274 = vmatpush2.msra.mxu0 0.0
    %275 = vmatprep.subr.mxu0 0.0
    %276 = vmatpush2.msra.mxu0 0.0
    %277 = vmatprep.subr.mxu0 0.0
    %278 = vmatpush2.msra.mxu0 0.0
    %279 = vmatprep.subr.mxu0 0.0
    %280 = vmatpush2.msra.mxu0 0.0
    %281 = vmatprep.subr.mxu0 0.0
    %282 = vmatpush2.msra.mxu0 0.0
    %283 = vmatprep.subr.mxu0 0.0
    %284 = vmatpush2.msra.mxu0 0.0
    %285 = vmatprep.subr.mxu0 0.0
    %286 = vmatpush2.msra.mxu0 0.0
    %287 = vmatprep.subr.mxu0 0.0
    %288 = vmatpush2.msra.mxu0 0.0
    %289 = vmatprep.subr.mxu0 0.0
    %290 = vmatpush2.msra.mxu0 0.0
    %291 = vmatprep.subr.mxu0 0.0
    %292 = vmatpush2.msra.mxu0 0.0
    %293 = vmatprep.mubr.f32.mxu0 0.0
    %294 = vmatmul.mubr.f32.gmra.mxu0 %v227
    %v295 = vpop.f32.mrf.mxu0
    %v296 = vadd.f32 %v223, %v295
    %v297 = vpop.f32.mrf.mxu0
    %298 = vdwg.mxu0
    %v299 = vmax.f32 %v296, 0.0
    %s300 = scalar_lea.vmem [#allocation2], 384
    %v301 = vld [vmem:[%s300] sm:$0xff]
    %v302 = vld [vmem:[%s300 + $0x8] sm:$0xff]
    %v303 = vld [vmem:[%s300 + $0x10] sm:$0xff]
    %v304 = vld [vmem:[%s300 + $0x18] sm:$0xff]
    %s305 = scalar_lea.vmem %s2, 3
    %v306 = vld [vmem:[%s305] sm:$0x1]
    %v308 = vlaneseq
    %v309 = vshrl.u32 %v308, 7
    %v310 = vsub.s32 0, %v309
    %v311 = vrot.slane %v306, %v310
    %vm313 = vcmask 261120
    %v315 = vsel %vm313, %v299, 0
    %317 = vmatprep.subr.mxu0 0.0
    %318 = vmatpush1.msra.mxu0 0.0
    %319 = vmatprep.subr.mxu0 0.0
    %320 = vmatpush1.msra.mxu0 0.0
    %321 = vmatprep.subr.mxu0 0.0
    %322 = vmatpush1.msra.mxu0 0.0
    %323 = vmatprep.subr.mxu0 0.0
    %324 = vmatpush1.msra.mxu0 0.0
    %325 = vmatprep.subr.mxu0 0.0
    %326 = vmatpush1.msra.mxu0 0.0
    %327 = vmatprep.subr.mxu0 0.0
    %328 = vmatpush1.msra.mxu0 0.0
    %329 = vmatprep.subr.mxu0 0.0
    %330 = vmatpush1.msra.mxu0 0.0
    %331 = vmatprep.subr.mxu0 0.0
    %332 = vmatpush1.msra.mxu0 0.0
    %333 = vmatprep.subr.mxu0 0.0
    %334 = vmatpush1.msra.mxu0 0.0
    %335 = vmatprep.subr.mxu0 0.0
    %336 = vmatpush1.msra.mxu0 0.0
    %337 = vmatprep.subr.mxu0 0.0
    %338 = vmatpush1.msra.mxu0 0.0
    %339 = vmatprep.subr.mxu0 0.0
    %340 = vmatpush1.msra.mxu0 0.0
    %341 = vmatprep.subr.mxu0 0.0
    %342 = vmatpush1.msra.mxu0 %v304
    %343 = vmatprep.subr.mxu0 0.0
    %344 = vmatpush1.msra.mxu0 %v303
    %345 = vmatprep.subr.mxu0 0.0
    %346 = vmatpush1.msra.mxu0 %v302
    %347 = vmatprep.subr.mxu0 0.0
    %348 = vmatpush1.msra.mxu0 %v301
    %349 = vmatprep.subr.mxu0 0.0
    %350 = vmatpush2.msra.mxu0 0.0
    %351 = vmatprep.subr.mxu0 0.0
    %352 = vmatpush2.msra.mxu0 0.0
    %353 = vmatprep.subr.mxu0 0.0
    %354 = vmatpush2.msra.mxu0 0.0
    %355 = vmatprep.subr.mxu0 0.0
    %356 = vmatpush2.msra.mxu0 0.0
    %357 = vmatprep.subr.mxu0 0.0
    %358 = vmatpush2.msra.mxu0 0.0
    %359 = vmatprep.subr.mxu0 0.0
    %360 = vmatpush2.msra.mxu0 0.0
    %361 = vmatprep.subr.mxu0 0.0
    %362 = vmatpush2.msra.mxu0 0.0
    %363 = vmatprep.subr.mxu0 0.0
    %364 = vmatpush2.msra.mxu0 0.0
    %365 = vmatprep.subr.mxu0 0.0
    %366 = vmatpush2.msra.mxu0 0.0
    %367 = vmatprep.subr.mxu0 0.0
    %368 = vmatpush2.msra.mxu0 0.0
    %369 = vmatprep.subr.mxu0 0.0
    %370 = vmatpush2.msra.mxu0 0.0
    %371 = vmatprep.subr.mxu0 0.0
    %372 = vmatpush2.msra.mxu0 0.0
    %373 = vmatprep.subr.mxu0 0.0
    %374 = vmatpush2.msra.mxu0 0.0
    %375 = vmatprep.subr.mxu0 0.0
    %376 = vmatpush2.msra.mxu0 0.0
    %377 = vmatprep.subr.mxu0 0.0
    %378 = vmatpush2.msra.mxu0 0.0
    %379 = vmatprep.subr.mxu0 0.0
    %380 = vmatpush2.msra.mxu0 0.0
    %381 = vmatprep.mubr.f32.mxu0 0.0
    %382 = vmatmul.mubr.f32.gmra.mxu0 %v315
    %v383 = vpop.f32.mrf.mxu0
    %v384 = vadd.f32 %v311, %v383
    %v385 = vpop.f32.mrf.mxu0
    %386 = vdwg.mxu0
    %v387 = vmax.f32 %v384, 0.0
    %vm388 = vcmask 7168
    %389 = vst.msk [vmem:[%s3] sm:$0xff] %vm388, %v387
    // Predicated region
    $region18: #{critic_forward.1} parent=1 // pred_check
      _
    $region19: #{critic_forward.1} parent=1 // pred_check_branch
      %391 = sbr.rel (0) target = $region21
    $region20: #{critic_forward.1} parent=1 // pred_region
      _
    $region21: #{critic_forward.1} parent=1 // pred_fallthru
      _
    // Predicated region
    $region22: #{critic_forward.1} parent=1 // pred_check
      _
    $region23: #{critic_forward.1} parent=1 // pred_check_branch
      %393 = sbr.rel (0) target = $region25
    $region24: #{critic_forward.1} parent=1 // pred_region
      _
    $region25: #{critic_forward.1} parent=1 // pred_fallthru
      _
    %394 = vsyncpa [#allocation3], 1

</llo_original>
